<compile_context>
chip_gen: v7x
topology: tpu7x:2x2x1
jax: 0.10.0
libtpu: 0.0.40
codegen_flags: <defaults>
</compile_context>

<pallas_src>
import jax
import jax.numpy as jnp
from jax import lax
from jax.experimental import pallas as pl
from jax.experimental.pallas import tpu as pltpu

LANE = 128     # lane width (last dim tile)
SUBLANE = 8    # f32 sublane count (second-to-last dim tile)


def _round_up(x, m):
    return ((x + m - 1) // m) * m


# ----------------------------------------------------------------------------
# Single-step kernel (the module's forward).  Inputs go straight to VMEM
# (no wrapper-side concat/pad HBM round trip); three dots accumulate in f32.
# ----------------------------------------------------------------------------
def _rnn_step_kernel(x_ref, hprev_ref, oprev_ref, wi_ref, wh_ref, wo_ref,
                     bh_ref, who_ref, bo_ref, out_ref, h_ref):
    pre = (jnp.dot(x_ref[...], wi_ref[...], preferred_element_type=jnp.float32)
           + jnp.dot(hprev_ref[...], wh_ref[...],
                     preferred_element_type=jnp.float32)
           + jnp.dot(oprev_ref[...], wo_ref[...],
                     preferred_element_type=jnp.float32)
           + bh_ref[...])
    h = jax.nn.sigmoid(pre)                         # nonlin='sigmoid'
    h_ref[...] = h.astype(h_ref.dtype)
    out = jnp.dot(h, who_ref[...], preferred_element_type=jnp.float32) + bo_ref[...]
    out_ref[...] = out.astype(out_ref.dtype)


# ----------------------------------------------------------------------------
# Sequence kernel factory: TB recurrence steps per grid step, ONE fused MXU
# matmul per step against the slab-placed weights (weights stay VMEM-resident
# via constant index_maps), state carried in two VMEM scratch refs.
# ----------------------------------------------------------------------------
def _make_seq_kernel(D, H, Bp, P, TB, return_hidden):
    def kernel(x_ref, h0_ref, o0_ref, wf_ref, bh_ref, who_ref, bo_ref, *rest):
        if return_hidden:
            out_seq_ref, h_seq_ref, s_h, s_o = rest
        else:
            out_seq_ref, s_h, s_o = rest
            h_seq_ref = None

        @pl.when(pl.program_id(0) == 0)
        def _():
            s_h[...] = h0_ref[...]
            s_o[...] = o0_ref[...]

        # Hoisted once per grid step, reused by all TB inner steps
        # (JAX does not CSE broadcast_in_dim / iota inside the loop).
        bh_b = pl.broadcast_to(bh_ref[...], (Bp, P))
        bo_b = pl.broadcast_to(bo_ref[...], (Bp, P))
        lane = lax.broadcasted_iota(jnp.int32, (Bp, P), 1)
        is_data = lane < D
        is_hid = lane < D + H

        def step(t, carry):
            h_prev, o_prev = carry                  # slab-placed layout (Bp, P)
            # slab lanes: [0:D)=data_t, [D:D+H)=h_prev, [D+H:D+H+O)=o_prev.
            # h_prev/o_prev are already produced at those lane positions by the
            # column-shifted weights, so this is just two VPU selects.
            slab = jnp.where(is_data, x_ref[t],
                             jnp.where(is_hid, h_prev, o_prev))
            pre = jnp.dot(slab, wf_ref[...],
                          preferred_element_type=jnp.float32) + bh_b
            h = jax.nn.sigmoid(pre)                 # real h at lanes [D:D+H)
            out = jnp.dot(h, who_ref[...],
                          preferred_element_type=jnp.float32) + bo_b
            out_seq_ref[t] = out.astype(out_seq_ref.dtype)
            if return_hidden:
                h_seq_ref[t] = h.astype(h_seq_ref.dtype)
            return (h, out)

        h_last, o_last = lax.fori_loop(0, TB, step, (s_h[...], s_o[...]),
                                       unroll=True)
        s_h[...] = h_last                           # carry state to next block
        s_o[...] = o_last

    return kernel


# ----------------------------------------------------------------------------
# Parameter init (mirrors the PyTorch module's __init__ ranges) and packing.
# ----------------------------------------------------------------------------
def init_params(key, input_size, hidden_size, output_size, feedback_scaling):
    k1, k2, k3, k4, k5 = jax.random.split(key, 5)
    fs = feedback_scaling
    # stored pre-transposed: (in_features, out_features); uniform ranges are
    # symmetric so the distribution matches the PyTorch (out, in) init.
    Wi = jax.random.uniform(k1, (input_size, hidden_size), jnp.float32, -1.0, 1.0)
    Wh = jax.random.uniform(k2, (hidden_size, hidden_size), jnp.float32, -0.5, 0.5)
    bh = jnp.full((hidden_size,), -1.0, jnp.float32)
    Wo = jax.random.uniform(k3, (output_size, hidden_size), jnp.float32, -fs, fs)
    Who = jax.random.uniform(k4, (hidden_size, output_size), jnp.float32, -1.0, 1.0)
    bo = jax.random.uniform(k5, (output_size,), jnp.float32, -1.0, 1.0)
    return dict(Wi=Wi, Wh=Wh, bh=bh, Wo=Wo, Who=Who, bo=bo)


def pack_params(p):
    """One-time pad/fuse of the weights into lane-dense kernel layouts."""
    D = p["Wi"].shape[0]
    H = p["Wh"].shape[0]
    O = p["Who"].shape[1]
    P = _round_up(D + H + O, LANE)       # single padded lane width used everywhere
    f32 = jnp.float32

    # --- natural layout (h at lanes [0:H), out at lanes [0:O)) for the step kernel
    Wi_p = jnp.zeros((D, P), f32).at[:, :H].set(p["Wi"])
    Wh_p = jnp.zeros((H, P), f32).at[:, :H].set(p["Wh"])
    Wo_p = jnp.zeros((O, P), f32).at[:, :H].set(p["Wo"])
    bh_p = jnp.zeros((1, P), f32).at[0, :H].set(p["bh"])
    Who_p = jnp.zeros((P, P), f32).at[:H, :O].set(p["Who"])
    bo_p = jnp.zeros((1, P), f32).at[0, :O].set(p["bo"])

    # --- slab-placed layout for the sequence kernel.  The weight COLUMNS are
    # shifted so that the hidden / output activations come out of the matmul
    # already at their slab lane positions (h -> [D:D+H), o -> [D+H:D+H+O)).
    # All padded rows/cols stay exactly zero so sigmoid(0)=0.5 in padded lanes
    # never leaks into real lanes.
    hs, he = D, D + H
    qs, qe = D + H, D + H + O
    Wf_s = (jnp.zeros((P, P), f32)
            .at[0:D, hs:he].set(p["Wi"])
            .at[hs:he, hs:he].set(p["Wh"])
            .at[qs:qe, hs:he].set(p["Wo"]))
    bh_s = jnp.zeros((1, P), f32).at[0, hs:he].set(p["bh"])
    Who_s = jnp.zeros((P, P), f32).at[hs:he, qs:qe].set(p["Who"])
    bo_s = jnp.zeros((1, P), f32).at[0, qs:qe].set(p["bo"])

    return dict(D=D, H=H, O=O, P=P,
                Wi_p=Wi_p, Wh_p=Wh_p, Wo_p=Wo_p, bh_p=bh_p,
                Who_p=Who_p, bo_p=bo_p,
                Wf_s=Wf_s, bh_s=bh_s, Who_s=Who_s, bo_s=bo_s)


# ----------------------------------------------------------------------------
# Wrappers
# ----------------------------------------------------------------------------
def rnn_one_layer_forward(data, h_prev, o_prev, packed):
    """Module-faithful single step: (data, h_prev, o_prev) -> (output, h)."""
    B, D = data.shape
    H, O, P = packed["H"], packed["O"], packed["P"]
    K = D + H + O

    vmem = pl.BlockSpec(memory_space=pltpu.MemorySpace.VMEM)
    cost = pl.CostEstimate(
        flops=2 * B * K * P + 2 * B * P * P,
        transcendentals=B * P,
        bytes_accessed=4 * (B * K + K * P + P * P + 2 * P + 2 * B * P),
    )
    out_p, h_p = pl.pallas_call(
        _rnn_step_kernel,
        out_shape=(jax.ShapeDtypeStruct((B, P), jnp.float32),
                   jax.ShapeDtypeStruct((B, P), jnp.float32)),
        in_specs=[vmem] * 9,
        out_specs=(vmem, vmem),
        cost_estimate=cost,
    )(data, h_prev, o_prev,
      packed["Wi_p"], packed["Wh_p"], packed["Wo_p"],
      packed["bh_p"], packed["Who_p"], packed["bo_p"])
    return out_p[:, :O], h_p[:, :H]


def rnn_one_layer_sequence(data_seq, h0, o0, packed, *,
                           time_block=8, return_hidden=True):
    """Run the T-step recurrence inside one pallas_call, TB steps per grid step."""
    T, B, D = data_seq.shape
    H, O, P = packed["H"], packed["O"], packed["P"]
    Bp = _round_up(B, SUBLANE)
    TB = max(1, int(min(time_block, T)))
    Tp = _round_up(T, TB)
    nblk = Tp // TB

    # One-time layout plumbing (amortised over the whole sequence):
    #   time -> multiple of TB, batch -> 8 sublanes, lanes -> P (data at [0:D)).
    x = jnp.pad(data_seq.astype(jnp.float32),
                ((0, Tp - T), (0, Bp - B), (0, P - D)))
    # initial state, slab-placed: h0 at lanes [D:D+H), o0 at [D+H:D+H+O)
    h0_s = jnp.zeros((Bp, P), jnp.float32).at[:B, D:D + H].set(h0)
    o0_s = jnp.zeros((Bp, P), jnp.float32).at[:B, D + H:D + H + O].set(o0)

    const2 = lambda t: (0, 0)
    in_specs = [
        pl.BlockSpec((TB, Bp, P), lambda t: (t, 0, 0)),   # data block (streamed)
        pl.BlockSpec((Bp, P), const2),                    # h0 (placed)
        pl.BlockSpec((Bp, P), const2),                    # o0 (placed)
        pl.BlockSpec((P, P), const2),                     # Wf  (VMEM-resident)
        pl.BlockSpec((1, P), const2),                     # bh
        pl.BlockSpec((P, P), const2),                     # Who (VMEM-resident)
        pl.BlockSpec((1, P), const2),                     # bo
    ]
    out_block = pl.BlockSpec((TB, Bp, P), lambda t: (t, 0, 0))
    if return_hidden:
        out_specs = (out_block, out_block)
        out_shape = (jax.ShapeDtypeStruct((Tp, Bp, P), jnp.float32),
                     jax.ShapeDtypeStruct((Tp, Bp, P), jnp.float32))
    else:
        out_specs = out_block
        out_shape = jax.ShapeDtypeStruct((Tp, Bp, P), jnp.float32)

    grid_spec = pltpu.PrefetchScalarGridSpec(
        num_scalar_prefetch=0,
        grid=(nblk,),
        in_specs=in_specs,
        out_specs=out_specs,
        scratch_shapes=[pltpu.VMEM((Bp, P), jnp.float32),   # h carry (placed)
                        pltpu.VMEM((Bp, P), jnp.float32)],  # o carry (placed)
    )
    n_out = 2 if return_hidden else 1
    cost = pl.CostEstimate(
        flops=Tp * 4 * Bp * P * P,
        transcendentals=Tp * Bp * P,
        bytes_accessed=4 * (Tp * Bp * P * (1 + n_out) + 2 * P * P
                            + 4 * Bp * P + 2 * P),
    )
    kernel = _make_seq_kernel(D, H, Bp, P, TB, return_hidden)
    res = pl.pallas_call(
        kernel,
        out_shape=out_shape,
        grid_spec=grid_spec,
        compiler_params=pltpu.CompilerParams(
            dimension_semantics=("arbitrary",),          # sequential recurrence
            vmem_limit_bytes=32 * 1024 * 1024),
        cost_estimate=cost,
    )(x, h0_s, o0_s, packed["Wf_s"], packed["bh_s"], packed["Who_s"],
      packed["bo_s"])

    if return_hidden:
        out_seq, h_seq = res
        return (out_seq[:T, :B, D + H:D + H + O], h_seq[:T, :B, D:D + H])
    return res[:T, :B, D + H:D + H + O]


# ----------------------------------------------------------------------------
# Pure-JAX references
# ----------------------------------------------------------------------------
def reference_forward(data, h_prev, o_prev, p):
    pre = data @ p["Wi"] + h_prev @ p["Wh"] + p["bh"] + o_prev @ p["Wo"]
    h = jax.nn.sigmoid(pre)
    out = h @ p["Who"] + p["bo"]
    return out, h


def reference_sequence(data_seq, h0, o0, p):
    def step(carry, x_t):
        h_prev, o_prev = carry
        out, h = reference_forward(x_t, h_prev, o_prev, p)
        return (h, out), (out, h)
    _, (outs, hs) = jax.lax.scan(step, (h0, o0), data_seq)
    return outs, hs


if __name__ == "__main__":
    batch, input_size, hidden_size, output_size = 2, 16, 32, 8
    seq_len, time_block = 10, 4            # T % TB != 0 exercises time padding
    feedback_scaling = 0.1

    key = jax.random.PRNGKey(0)
    kp, kd, ks = jax.random.split(key, 3)
    params = init_params(kp, input_size, hidden_size, output_size, feedback_scaling)
    packed = pack_params(params)

    data = jax.random.normal(kd, (batch, input_size), jnp.float32)
    # init_states: h0 = 0.5, output = 0
    h_prev = jnp.full((batch, hidden_size), 0.5, jnp.float32)
    o_prev = jnp.zeros((batch, output_size), jnp.float32)

    # ---- single step (the module's forward) ----
    out, h = rnn_one_layer_forward(data, h_prev, o_prev, packed)
    jax.block_until_ready((out, h))
    out_ref, h_ref = reference_forward(data, h_prev, o_prev, params)
    assert out.shape == (batch, output_size) and h.shape == (batch, hidden_size)
    assert jnp.allclose(out, out_ref, atol=1e-4, rtol=1e-4)
    assert jnp.allclose(h, h_ref, atol=1e-4, rtol=1e-4)

    # ---- time-blocked T-step recurrence in one kernel launch ----
    data_seq = jax.random.normal(ks, (seq_len, batch, input_size), jnp.float32)
    out_seq, h_seq = rnn_one_layer_sequence(data_seq, h_prev, o_prev, packed,
                                            time_block=time_block,
                                            return_hidden=True)
    jax.block_until_ready((out_seq, h_seq))
    out_seq_ref, h_seq_ref = reference_sequence(data_seq, h_prev, o_prev, params)
    assert out_seq.shape == (seq_len, batch, output_size)
    assert h_seq.shape == (seq_len, batch, hidden_size)
    assert jnp.allclose(out_seq, out_seq_ref, atol=1e-4, rtol=1e-4)
    assert jnp.allclose(h_seq, h_seq_ref, atol=1e-4, rtol=1e-4)

    # ---- inference-style path: skip the hidden-state writeback ----
    out_only = rnn_one_layer_sequence(data_seq, h_prev, o_prev, packed,
                                      time_block=time_block,
                                      return_hidden=False)
    jax.block_until_ready(out_only)
    assert jnp.allclose(out_only, out_seq_ref, atol=1e-4, rtol=1e-4)

    print("KERNEL_OK")
</pallas_src>

<mosaic_0001>
module attributes {stable_mosaic.version = 11 : i64} {
  func.func @_rnn_step_kernel(%arg0: memref<2x16xf32, #tpu.memory_space<vmem>>, %arg1: memref<2x32xf32, #tpu.memory_space<vmem>>, %arg2: memref<2x8xf32, #tpu.memory_space<vmem>>, %arg3: memref<16x128xf32, #tpu.memory_space<vmem>>, %arg4: memref<32x128xf32, #tpu.memory_space<vmem>>, %arg5: memref<8x128xf32, #tpu.memory_space<vmem>>, %arg6: memref<1x128xf32, #tpu.memory_space<vmem>>, %arg7: memref<128x128xf32, #tpu.memory_space<vmem>>, %arg8: memref<1x128xf32, #tpu.memory_space<vmem>>, %arg9: memref<2x128xf32, #tpu.memory_space<vmem>>, %arg10: memref<2x128xf32, #tpu.memory_space<vmem>>) attributes {dimension_semantics = [], scalar_prefetch = 0 : i64, scratch_operands = 0 : i64, tpu.core_type = #tpu.core_type<tc>} {
    %c0 = arith.constant 0 : index
    %c0_0 = arith.constant 0 : index
    %0 = vector.load %arg0[%c0, %c0_0] : memref<2x16xf32, #tpu.memory_space<vmem>>, vector<2x16xf32>
    %c0_1 = arith.constant 0 : index
    %c0_2 = arith.constant 0 : index
    %1 = vector.load %arg3[%c0_1, %c0_2] : memref<16x128xf32, #tpu.memory_space<vmem>>, vector<16x128xf32>
    %cst = arith.constant dense<0.000000e+00> : vector<2x128xf32>
    %2 = tpu.matmul %0, %1, %cst {dimension_numbers = #tpu.dot_dimension_numbers<[1], [0], [0], [1], [0, 0, 1, 1], [], []>} : vector<2x16xf32>, vector<16x128xf32>, vector<2x128xf32> -> vector<2x128xf32>
    %c0_3 = arith.constant 0 : index
    %c0_4 = arith.constant 0 : index
    %3 = vector.load %arg1[%c0_3, %c0_4] : memref<2x32xf32, #tpu.memory_space<vmem>>, vector<2x32xf32>
    %c0_5 = arith.constant 0 : index
    %c0_6 = arith.constant 0 : index
    %4 = vector.load %arg4[%c0_5, %c0_6] : memref<32x128xf32, #tpu.memory_space<vmem>>, vector<32x128xf32>
    %cst_7 = arith.constant dense<0.000000e+00> : vector<2x128xf32>
    %5 = tpu.matmul %3, %4, %cst_7 {dimension_numbers = #tpu.dot_dimension_numbers<[1], [0], [0], [1], [0, 0, 1, 1], [], []>} : vector<2x32xf32>, vector<32x128xf32>, vector<2x128xf32> -> vector<2x128xf32>
    %6 = arith.addf %2, %5 : vector<2x128xf32>
    %c0_8 = arith.constant 0 : index
    %c0_9 = arith.constant 0 : index
    %7 = vector.load %arg2[%c0_8, %c0_9] : memref<2x8xf32, #tpu.memory_space<vmem>>, vector<2x8xf32>
    %c0_10 = arith.constant 0 : index
    %c0_11 = arith.constant 0 : index
    %8 = vector.load %arg5[%c0_10, %c0_11] : memref<8x128xf32, #tpu.memory_space<vmem>>, vector<8x128xf32>
    %cst_12 = arith.constant dense<0.000000e+00> : vector<2x128xf32>
    %9 = tpu.matmul %7, %8, %cst_12 {dimension_numbers = #tpu.dot_dimension_numbers<[1], [0], [0], [1], [0, 0, 1, 1], [], []>} : vector<2x8xf32>, vector<8x128xf32>, vector<2x128xf32> -> vector<2x128xf32>
    %10 = arith.addf %6, %9 : vector<2x128xf32>
    %c0_13 = arith.constant 0 : index
    %c0_14 = arith.constant 0 : index
    %11 = vector.load %arg6[%c0_13, %c0_14] : memref<1x128xf32, #tpu.memory_space<vmem>>, vector<1x128xf32>
    %12 = vector.broadcast %11 : vector<1x128xf32> to vector<2x128xf32>
    %13 = arith.addf %10, %12 : vector<2x128xf32>
    %14 = arith.negf %13 : vector<2x128xf32>
    %15 = math.exp %14 : vector<2x128xf32>
    %cst_15 = arith.constant 1.000000e+00 : f32
    %16 = vector.broadcast %cst_15 : f32 to vector<2x128xf32>
    %17 = arith.addf %16, %15 : vector<2x128xf32>
    %18 = arith.divf %16, %17 : vector<2x128xf32>
    %c0_16 = arith.constant 0 : index
    %c0_17 = arith.constant 0 : index
    %19 = vector.load %arg10[%c0_16, %c0_17] : memref<2x128xf32, #tpu.memory_space<vmem>>, vector<2x128xf32>
    tpu.vector_store %arg10[%c0_16, %c0_17], %18 {strides = array<i32>} : memref<2x128xf32, #tpu.memory_space<vmem>>, vector<2x128xf32>,
    %c0_18 = arith.constant 0 : index
    %c0_19 = arith.constant 0 : index
    %20 = vector.load %arg7[%c0_18, %c0_19] : memref<128x128xf32, #tpu.memory_space<vmem>>, vector<128x128xf32>
    %cst_20 = arith.constant dense<0.000000e+00> : vector<2x128xf32>
    %21 = tpu.matmul %18, %20, %cst_20 {dimension_numbers = #tpu.dot_dimension_numbers<[1], [0], [0], [1], [0, 0, 1, 1], [], []>} : vector<2x128xf32>, vector<128x128xf32>, vector<2x128xf32> -> vector<2x128xf32>
    %c0_21 = arith.constant 0 : index
    %c0_22 = arith.constant 0 : index
    %22 = vector.load %arg8[%c0_21, %c0_22] : memref<1x128xf32, #tpu.memory_space<vmem>>, vector<1x128xf32>
    %23 = vector.broadcast %22 : vector<1x128xf32> to vector<2x128xf32>
    %24 = arith.addf %21, %23 : vector<2x128xf32>
    %c0_23 = arith.constant 0 : index
    %c0_24 = arith.constant 0 : index
    %25 = vector.load %arg9[%c0_23, %c0_24] : memref<2x128xf32, #tpu.memory_space<vmem>>, vector<2x128xf32>
    tpu.vector_store %arg9[%c0_23, %c0_24], %24 {strides = array<i32>} : memref<2x128xf32, #tpu.memory_space<vmem>>, vector<2x128xf32>,
    return
  }
}

</mosaic_0001>

<llo_original>
// kernel: tpu_custom_call.1
$region0: #{tpu_custom_call.1}
  #allocation0 [shape = 'u32[]', space=smem, size = 0x4, offset = 0x4, fixed_abs, tag = 'smem constant byte address 0x4 - core index']
  #allocation1 [shape = 'u32[144,128]{1,0:T(1,128)}', space=vmem, size = 0x12000, scoped, tag = 'internal scratch']
  %s0 = inlined_call_operand.hbm [shape: f32[2,16], index: 0, kind: input, shape index: {}]
  %s1 = inlined_call_operand.vmem [shape: f32[2,32], index: 1, kind: input, shape index: {}]
  %s2 = inlined_call_operand.vmem [shape: f32[2,8], index: 2, kind: input, shape index: {}]
  %s3 = inlined_call_operand.hbm [shape: f32[16,128], index: 3, kind: input, shape index: {}]
  %s4 = inlined_call_operand.hbm [shape: f32[32,128], index: 4, kind: input, shape index: {}]
  %s5 = inlined_call_operand.vmem [shape: f32[8,128], index: 5, kind: input, shape index: {}]
  %s6 = inlined_call_operand.vmem [shape: f32[1,128], index: 6, kind: input, shape index: {}]
  %s7 = inlined_call_operand.hbm [shape: f32[128,128], index: 7, kind: input, shape index: {}]
  %s8 = inlined_call_operand.vmem [shape: f32[1,128], index: 8, kind: input, shape index: {}]
  %s9 = inlined_call_operand.hbm [shape: f32[2,128], index: 9, kind: output, shape index: {0}]
  %s10 = inlined_call_operand.hbm [shape: f32[2,128], index: 10, kind: output, shape index: {1}]
  %11 = xla_tuple %s9, %s10
  %s12 = sld [smem:[#allocation0]]
  $region70: #{tpu_custom_call.1} parent=0
    _
  %s14 = ssub.s32 1, %s12
  %s15 = scalar_select 0, %s14, %s12
  $region1: #{tpu_custom_call.1} parent=0
    #allocation2 [shape = 'u8[1024]{0}', space=vmem, size = 0x400, scoped, tag = 'input window, operand 0, single buffered']
    #allocation3 [shape = 's32[1]{0}', space=sflag, size = 0x4, scoped, tag = 'scoped memory for tpu_custom_call.1']
    #allocation4 [shape = 's32[1]{0}', space=sflag, size = 0x4, scoped, tag = 'scoped memory for tpu_custom_call.1']
    #allocation5 [shape = 'u8[8192]{0}', space=vmem, size = 0x2000, scoped, tag = 'input window, operand 3, single buffered']
    #allocation6 [shape = 's32[1]{0}', space=sflag, size = 0x4, scoped, tag = 'scoped memory for tpu_custom_call.1']
    #allocation7 [shape = 'u8[16384]{0}', space=vmem, size = 0x4000, scoped, tag = 'input window, operand 4, single buffered']
    #allocation8 [shape = 'u8[65536]{0}', space=vmem, size = 0x10000, scoped, tag = 'input window, operand 7, single buffered']
    #allocation9 [shape = 's32[1]{0}', space=sflag, size = 0x4, scoped, tag = 'scoped memory for tpu_custom_call.1']
    #allocation10 [shape = 'u8[1024]{0}', space=vmem, size = 0x400, scoped, tag = 'output window, operand 0, single buffered']
    #allocation11 [shape = 'u8[1024]{0}', space=vmem, size = 0x400, scoped, tag = 'output window, operand 1, single buffered']
    #allocation12 [shape = 's32[1]{0}', space=sflag, size = 0x4, scoped, tag = 'scoped memory for tpu_custom_call.1']
    %16 = vsyncpa [#allocation3], 0
    %17 = vsyncpa [#allocation6], 0
    %18 = vsyncpa [#allocation9], 0
    %19 = vsyncpa [#allocation4], 0
    %20 = vsyncpa [#allocation12], 0
    // Predicated region
    $region2: #{tpu_custom_call.1} parent=1 // pred_check
      _
    $region3: #{tpu_custom_call.1} parent=1 // pred_check_branch
      %22 = sbr.rel (0) target = $region5
    $region4: #{tpu_custom_call.1} parent=1 // pred_region
      %s24 = ssub.s32 32, 32
      %25 = vsyncadd [#allocation3], %s24
      %s27 = sshll.u32 [#allocation2], 4
      %s28 = int_to_ptr.vmem [resolvable:$true] %s27
      %30 = dma.hbm_to_vmem [thread:$0]  %s0, 32, %s28, [#allocation3]
    $region5: #{tpu_custom_call.1} parent=1 // pred_fallthru
      _
    // Predicated region
    $region6: #{tpu_custom_call.1} parent=1 // pred_check
      _
    $region7: #{tpu_custom_call.1} parent=1 // pred_check_branch
      %32 = sbr.rel (0) target = $region9
    $region8: #{tpu_custom_call.1} parent=1 // pred_region
      _
    $region9: #{tpu_custom_call.1} parent=1 // pred_fallthru
      _
    // Predicated region
    $region10: #{tpu_custom_call.1} parent=1 // pred_check
      _
    $region11: #{tpu_custom_call.1} parent=1 // pred_check_branch
      %34 = sbr.rel (0) target = $region13
    $region12: #{tpu_custom_call.1} parent=1 // pred_region
      _
    $region13: #{tpu_custom_call.1} parent=1 // pred_fallthru
      _
    // Predicated region
    $region14: #{tpu_custom_call.1} parent=1 // pred_check
      _
    $region15: #{tpu_custom_call.1} parent=1 // pred_check_branch
      %36 = sbr.rel (0) target = $region17
    $region16: #{tpu_custom_call.1} parent=1 // pred_region
      %s38 = ssub.s32 256, 256
      %39 = vsyncadd [#allocation6], %s38
      %s40 = sshll.u32 [#allocation5], 4
      %s41 = int_to_ptr.vmem [resolvable:$true] %s40
      %46 = dma.hbm_to_vmem [thread:$0]  %s3, 256, %s41, [#allocation6], 128, 128, 8
    $region17: #{tpu_custom_call.1} parent=1 // pred_fallthru
      _
    // Predicated region
    $region18: #{tpu_custom_call.1} parent=1 // pred_check
      _
    $region19: #{tpu_custom_call.1} parent=1 // pred_check_branch
      %48 = sbr.rel (0) target = $region21
    $region20: #{tpu_custom_call.1} parent=1 // pred_region
      %s50 = ssub.s32 512, 512
      %51 = vsyncadd [#allocation6], %s50
      %s52 = sshll.u32 [#allocation7], 4
      %s53 = int_to_ptr.vmem [resolvable:$true] %s52
      %58 = dma.hbm_to_vmem [thread:$0]  %s4, 512, %s53, [#allocation6], 128, 128, 8
    $region21: #{tpu_custom_call.1} parent=1 // pred_fallthru
      _
    // Predicated region
    $region22: #{tpu_custom_call.1} parent=1 // pred_check
      _
    $region23: #{tpu_custom_call.1} parent=1 // pred_check_branch
      %60 = sbr.rel (0) target = $region25
    $region24: #{tpu_custom_call.1} parent=1 // pred_region
      _
    $region25: #{tpu_custom_call.1} parent=1 // pred_fallthru
      _
    // Predicated region
    $region26: #{tpu_custom_call.1} parent=1 // pred_check
      _
    $region27: #{tpu_custom_call.1} parent=1 // pred_check_branch
      %62 = sbr.rel (0) target = $region29
    $region28: #{tpu_custom_call.1} parent=1 // pred_region
      _
    $region29: #{tpu_custom_call.1} parent=1 // pred_fallthru
      _
    // Predicated region
    $region30: #{tpu_custom_call.1} parent=1 // pred_check
      _
    $region31: #{tpu_custom_call.1} parent=1 // pred_check_branch
      %64 = sbr.rel (0) target = $region33
    $region32: #{tpu_custom_call.1} parent=1 // pred_region
      %s66 = ssub.s32 2048, 2048
      %67 = vsyncadd [#allocation9], %s66
      %s68 = sshll.u32 [#allocation8], 4
      %s69 = int_to_ptr.vmem [resolvable:$true] %s68
      %74 = dma.hbm_to_vmem [thread:$0]  %s7, 2048, %s69, [#allocation9], 128, 128, 8
    $region33: #{tpu_custom_call.1} parent=1 // pred_fallthru
      _
    // Predicated region
    $region34: #{tpu_custom_call.1} parent=1 // pred_check
      _
    $region35: #{tpu_custom_call.1} parent=1 // pred_check_branch
      %76 = sbr.rel (0) target = $region37
    $region36: #{tpu_custom_call.1} parent=1 // pred_region
      _
    $region37: #{tpu_custom_call.1} parent=1 // pred_fallthru
      _
    // Predicated region
    $region38: #{tpu_custom_call.1} parent=1 // pred_check
      _
    $region39: #{tpu_custom_call.1} parent=1 // pred_check_branch
      %78 = sbr.rel (0) target = $region41
    $region40: #{tpu_custom_call.1} parent=1 // pred_region
      %79 = dma.done [#allocation3], 32
    $region41: #{tpu_custom_call.1} parent=1 // pred_fallthru
      _
    // Predicated region
    $region42: #{tpu_custom_call.1} parent=1 // pred_check
      _
    $region43: #{tpu_custom_call.1} parent=1 // pred_check_branch
      %81 = sbr.rel (0) target = $region45
    $region44: #{tpu_custom_call.1} parent=1 // pred_region
      %82 = dma.done [#allocation6], 256
    $region45: #{tpu_custom_call.1} parent=1 // pred_fallthru
      _
    // Predicated region
    $region46: #{tpu_custom_call.1} parent=1 // pred_check
      _
    $region47: #{tpu_custom_call.1} parent=1 // pred_check_branch
      %84 = sbr.rel (0) target = $region49
    $region48: #{tpu_custom_call.1} parent=1 // pred_region
      %85 = dma.done [#allocation6], 512
    $region49: #{tpu_custom_call.1} parent=1 // pred_fallthru
      _
    // Predicated region
    $region50: #{tpu_custom_call.1} parent=1 // pred_check
      _
    $region51: #{tpu_custom_call.1} parent=1 // pred_check_branch
      %87 = sbr.rel (0) target = $region53
    $region52: #{tpu_custom_call.1} parent=1 // pred_region
      %88 = dma.done [#allocation9], 2048
    $region53: #{tpu_custom_call.1} parent=1 // pred_fallthru
      _
    %v89 = vld [vmem:[#allocation2] sm:$0x3]
    %v90 = vld [vmem:[#allocation5] sm:$0xff]
    %v91 = vld [vmem:[#allocation5 + $0x8] sm:$0xff]
    %v92 = vld [vmem:[%s1] sm:$0x3]
    %v93 = vld [vmem:[#allocation7] sm:$0xff]
    %v94 = vld [vmem:[#allocation7 + $0x8] sm:$0xff]
    %v95 = vld [vmem:[#allocation7 + $0x10] sm:$0xff]
    %v96 = vld [vmem:[#allocation7 + $0x18] sm:$0xff]
    %vm97 = vcmask 261120
    %v99 = vsel %vm97, %v92, 0
    %101 = vmatprep.subr.mxu0 0.0
    %102 = vmatpush1.msra.mxu0 %v93
    %103 = vmatprep.subr.mxu0 0.0
    %104 = vmatpush1.msra.mxu0 %v94
    %105 = vmatprep.subr.mxu0 0.0
    %106 = vmatpush1.msra.mxu0 %v95
    %107 = vmatprep.subr.mxu0 0.0
    %108 = vmatpush1.msra.mxu0 %v96
    %109 = vmatprep.subr.mxu0 0.0
    %110 = vmatpush1.msra.mxu0 0.0
    %111 = vmatprep.subr.mxu0 0.0
    %112 = vmatpush1.msra.mxu0 0.0
    %113 = vmatprep.subr.mxu0 0.0
    %114 = vmatpush1.msra.mxu0 0.0
    %115 = vmatprep.subr.mxu0 0.0
    %116 = vmatpush1.msra.mxu0 0.0
    %117 = vmatprep.subr.mxu0 0.0
    %118 = vmatpush1.msra.mxu0 0.0
    %119 = vmatprep.subr.mxu0 0.0
    %120 = vmatpush1.msra.mxu0 0.0
    %121 = vmatprep.subr.mxu0 0.0
    %122 = vmatpush1.msra.mxu0 0.0
    %123 = vmatprep.subr.mxu0 0.0
    %124 = vmatpush1.msra.mxu0 0.0
    %125 = vmatprep.subr.mxu0 0.0
    %126 = vmatpush1.msra.mxu0 0.0
    %127 = vmatprep.subr.mxu0 0.0
    %128 = vmatpush1.msra.mxu0 0.0
    %129 = vmatprep.subr.mxu0 0.0
    %130 = vmatpush1.msra.mxu0 0.0
    %131 = vmatprep.subr.mxu0 0.0
    %132 = vmatpush1.msra.mxu0 0.0
    %133 = vmatprep.subr.mxu0 0.0
    %134 = vmatpush1.msra.mxu0 0.0
    %135 = vmatprep.subr.mxu0 0.0
    %136 = vmatpush1.msra.mxu0 0.0
    %137 = vmatprep.subr.mxu0 0.0
    %138 = vmatpush1.msra.mxu0 0.0
    %139 = vmatprep.subr.mxu0 0.0
    %140 = vmatpush1.msra.mxu0 0.0
    %141 = vmatprep.subr.mxu0 0.0
    %142 = vmatpush1.msra.mxu0 0.0
    %143 = vmatprep.subr.mxu0 0.0
    %144 = vmatpush1.msra.mxu0 0.0
    %145 = vmatprep.subr.mxu0 0.0
    %146 = vmatpush1.msra.mxu0 0.0
    %147 = vmatprep.subr.mxu0 0.0
    %148 = vmatpush1.msra.mxu0 0.0
    %149 = vmatprep.subr.mxu0 0.0
    %150 = vmatpush1.msra.mxu0 0.0
    %151 = vmatprep.subr.mxu0 0.0
    %152 = vmatpush1.msra.mxu0 0.0
    %153 = vmatprep.subr.mxu0 0.0
    %154 = vmatpush1.msra.mxu0 0.0
    %155 = vmatprep.subr.mxu0 0.0
    %156 = vmatpush1.msra.mxu0 0.0
    %157 = vmatprep.subr.mxu0 0.0
    %158 = vmatpush1.msra.mxu0 0.0
    %159 = vmatprep.subr.mxu0 0.0
    %160 = vmatpush1.msra.mxu0 0.0
    %161 = vmatprep.subr.mxu0 0.0
    %162 = vmatpush1.msra.mxu0 0.0
    %163 = vmatprep.subr.mxu0 0.0
    %164 = vmatpush1.msra.mxu0 0.0
    %165 = vmatprep.mubr.f32.mxu0 0.0
    %166 = vmatmul.mubr.f32.gmra.mrb[0].mxu0 %v99
    %v167 = vpop.f32.mrb[0].mxu0
    %v168 = vadd.f32 0.0, %v167
    %v169 = vpop.f32.mrb[0].mxu0
    %170 = vdwg.mxu0
    %vm171 = vcmask 130048
    %v173 = vsel %vm171, %v89, 0
    %175 = vmatprep.subr.mxu0 0.0
    %176 = vmatpush1.msra.mxu0 %v90
    %177 = vmatprep.subr.mxu0 0.0
    %178 = vmatpush1.msra.mxu0 %v91
    %179 = vmatprep.subr.mxu0 0.0
    %180 = vmatpush1.msra.mxu0 0.0
    %181 = vmatprep.subr.mxu0 0.0
    %182 = vmatpush1.msra.mxu0 0.0
    %183 = vmatprep.subr.mxu0 0.0
    %184 = vmatpush1.msra.mxu0 0.0
    %185 = vmatprep.subr.mxu0 0.0
    %186 = vmatpush1.msra.mxu0 0.0
    %187 = vmatprep.subr.mxu0 0.0
    %188 = vmatpush1.msra.mxu0 0.0
    %189 = vmatprep.subr.mxu0 0.0
    %190 = vmatpush1.msra.mxu0 0.0
    %191 = vmatprep.subr.mxu0 0.0
    %192 = vmatpush1.msra.mxu0 0.0
    %193 = vmatprep.subr.mxu0 0.0
    %194 = vmatpush1.msra.mxu0 0.0
    %195 = vmatprep.subr.mxu0 0.0
    %196 = vmatpush1.msra.mxu0 0.0
    %197 = vmatprep.subr.mxu0 0.0
    %198 = vmatpush1.msra.mxu0 0.0
    %199 = vmatprep.subr.mxu0 0.0
    %200 = vmatpush1.msra.mxu0 0.0
    %201 = vmatprep.subr.mxu0 0.0
    %202 = vmatpush1.msra.mxu0 0.0
    %203 = vmatprep.subr.mxu0 0.0
    %204 = vmatpush1.msra.mxu0 0.0
    %205 = vmatprep.subr.mxu0 0.0
    %206 = vmatpush1.msra.mxu0 0.0
    %207 = vmatprep.subr.mxu0 0.0
    %208 = vmatpush1.msra.mxu0 0.0
    %209 = vmatprep.subr.mxu0 0.0
    %210 = vmatpush1.msra.mxu0 0.0
    %211 = vmatprep.subr.mxu0 0.0
    %212 = vmatpush1.msra.mxu0 0.0
    %213 = vmatprep.subr.mxu0 0.0
    %214 = vmatpush1.msra.mxu0 0.0
    %215 = vmatprep.subr.mxu0 0.0
    %216 = vmatpush1.msra.mxu0 0.0
    %217 = vmatprep.subr.mxu0 0.0
    %218 = vmatpush1.msra.mxu0 0.0
    %219 = vmatprep.subr.mxu0 0.0
    %220 = vmatpush1.msra.mxu0 0.0
    %221 = vmatprep.subr.mxu0 0.0
    %222 = vmatpush1.msra.mxu0 0.0
    %223 = vmatprep.subr.mxu0 0.0
    %224 = vmatpush1.msra.mxu0 0.0
    %225 = vmatprep.subr.mxu0 0.0
    %226 = vmatpush1.msra.mxu0 0.0
    %227 = vmatprep.subr.mxu0 0.0
    %228 = vmatpush1.msra.mxu0 0.0
    %229 = vmatprep.subr.mxu0 0.0
    %230 = vmatpush1.msra.mxu0 0.0
    %231 = vmatprep.subr.mxu0 0.0
    %232 = vmatpush1.msra.mxu0 0.0
    %233 = vmatprep.subr.mxu0 0.0
    %234 = vmatpush1.msra.mxu0 0.0
    %235 = vmatprep.subr.mxu0 0.0
    %236 = vmatpush1.msra.mxu0 0.0
    %237 = vmatprep.subr.mxu0 0.0
    %238 = vmatpush1.msra.mxu0 0.0
    %239 = vmatprep.mubr.f32.mxu0 0.0
    %240 = vmatmul.mubr.f32.gmra.mrb[0].mxu0 %v173
    %v241 = vpop.f32.mrb[0].mxu0
    %v242 = vadd.f32 %v168, %v241
    %v243 = vpop.f32.mrb[0].mxu0
    %244 = vdwg.mxu0
    %v245 = vld [vmem:[%s2] sm:$0x3]
    %v246 = vld [vmem:[%s5] sm:$0xff]
    %vm247 = vcmask 64512
    %v249 = vsel %vm247, %v245, 0
    %251 = vmatprep.subr.mxu0 0.0
    %252 = vmatpush1.msra.mxu0 %v246
    %253 = vmatprep.subr.mxu0 0.0
    %254 = vmatpush1.msra.mxu0 0.0
    %255 = vmatprep.subr.mxu0 0.0
    %256 = vmatpush1.msra.mxu0 0.0
    %257 = vmatprep.subr.mxu0 0.0
    %258 = vmatpush1.msra.mxu0 0.0
    %259 = vmatprep.subr.mxu0 0.0
    %260 = vmatpush1.msra.mxu0 0.0
    %261 = vmatprep.subr.mxu0 0.0
    %262 = vmatpush1.msra.mxu0 0.0
    %263 = vmatprep.subr.mxu0 0.0
    %264 = vmatpush1.msra.mxu0 0.0
    %265 = vmatprep.subr.mxu0 0.0
    %266 = vmatpush1.msra.mxu0 0.0
    %267 = vmatprep.subr.mxu0 0.0
    %268 = vmatpush1.msra.mxu0 0.0
    %269 = vmatprep.subr.mxu0 0.0
    %270 = vmatpush1.msra.mxu0 0.0
    %271 = vmatprep.subr.mxu0 0.0
    %272 = vmatpush1.msra.mxu0 0.0
    %273 = vmatprep.subr.mxu0 0.0
    %274 = vmatpush1.msra.mxu0 0.0
    %275 = vmatprep.subr.mxu0 0.0
    %276 = vmatpush1.msra.mxu0 0.0
    %277 = vmatprep.subr.mxu0 0.0
    %278 = vmatpush1.msra.mxu0 0.0
    %279 = vmatprep.subr.mxu0 0.0
    %280 = vmatpush1.msra.mxu0 0.0
    %281 = vmatprep.subr.mxu0 0.0
    %282 = vmatpush1.msra.mxu0 0.0
    %283 = vmatprep.subr.mxu0 0.0
    %284 = vmatpush1.msra.mxu0 0.0
    %285 = vmatprep.subr.mxu0 0.0
    %286 = vmatpush1.msra.mxu0 0.0
    %287 = vmatprep.subr.mxu0 0.0
    %288 = vmatpush1.msra.mxu0 0.0
    %289 = vmatprep.subr.mxu0 0.0
    %290 = vmatpush1.msra.mxu0 0.0
    %291 = vmatprep.subr.mxu0 0.0
    %292 = vmatpush1.msra.mxu0 0.0
    %293 = vmatprep.subr.mxu0 0.0
    %294 = vmatpush1.msra.mxu0 0.0
    %295 = vmatprep.subr.mxu0 0.0
    %296 = vmatpush1.msra.mxu0 0.0
    %297 = vmatprep.subr.mxu0 0.0
    %298 = vmatpush1.msra.mxu0 0.0
    %299 = vmatprep.subr.mxu0 0.0
    %300 = vmatpush1.msra.mxu0 0.0
    %301 = vmatprep.subr.mxu0 0.0
    %302 = vmatpush1.msra.mxu0 0.0
    %303 = vmatprep.subr.mxu0 0.0
    %304 = vmatpush1.msra.mxu0 0.0
    %305 = vmatprep.subr.mxu0 0.0
    %306 = vmatpush1.msra.mxu0 0.0
    %307 = vmatprep.subr.mxu0 0.0
    %308 = vmatpush1.msra.mxu0 0.0
    %309 = vmatprep.subr.mxu0 0.0
    %310 = vmatpush1.msra.mxu0 0.0
    %311 = vmatprep.subr.mxu0 0.0
    %312 = vmatpush1.msra.mxu0 0.0
    %313 = vmatprep.subr.mxu0 0.0
    %314 = vmatpush1.msra.mxu0 0.0
    %315 = vmatprep.mubr.f32.mxu0 0.0
    %316 = vmatmul.mubr.f32.gmra.mrb[0].mxu0 %v249
    %v317 = vpop.f32.mrb[0].mxu0
    %v318 = vadd.f32 0.0, %v317
    %v319 = vpop.f32.mrb[0].mxu0
    %320 = vdwg.mxu0
    %v321 = vadd.f32 %v242, %v318
    %v322 = vld [vmem:[%s6] sm:$0x1]
    %v324 = vlaneseq
    %v325 = vshrl.u32 %v324, 7
    %v326 = vsub.s32 0, %v325
    %v327 = vrot.slane %v322, %v326
    %v329 = vadd.f32 %v321, %v327
    %v330 = vxor.u32 %v329, 2147483648
    %v331 = vmul.f32 %v330, 1.442695
    %v332 = vpow.pop %v331
    %v333 = vadd.f32 %v332, 1.0
    %v334 = vrcp.pop %v333
    %v335 = vmul.f32 1.0, %v334
    %336 = vst [vmem:[#allocation11] sm:$0x3] %v335
    %v337 = vld [vmem:[#allocation8] sm:$0xff]
    %v338 = vld [vmem:[#allocation8 + $0x8] sm:$0xff]
    %v339 = vld [vmem:[#allocation8 + $0x10] sm:$0xff]
    %v340 = vld [vmem:[#allocation8 + $0x18] sm:$0xff]
    %v341 = vld [vmem:[#allocation8 + $0x20] sm:$0xff]
    %v342 = vld [vmem:[#allocation8 + $0x28] sm:$0xff]
    %v343 = vld [vmem:[#allocation8 + $0x30] sm:$0xff]
    %v344 = vld [vmem:[#allocation8 + $0x38] sm:$0xff]
    %v345 = vld [vmem:[#allocation8 + $0x40] sm:$0xff]
    %v346 = vld [vmem:[#allocation8 + $0x48] sm:$0xff]
    %v347 = vld [vmem:[#allocation8 + $0x50] sm:$0xff]
    %v348 = vld [vmem:[#allocation8 + $0x58] sm:$0xff]
    %v349 = vld [vmem:[#allocation8 + $0x60] sm:$0xff]
    %v350 = vld [vmem:[#allocation8 + $0x68] sm:$0xff]
    %v351 = vld [vmem:[#allocation8 + $0x70] sm:$0xff]
    %v352 = vld [vmem:[#allocation8 + $0x78] sm:$0xff]
    %v353 = vld [vmem:[%s8] sm:$0x1]
    %v355 = vlaneseq
    %v356 = vshrl.u32 %v355, 7
    %v357 = vsub.s32 0, %v356
    %v358 = vrot.slane %v353, %v357
    %360 = vmatprep.subr.mxu0 0.0
    %361 = vmatpush1.msra.mxu0 %v337
    %362 = vmatprep.subr.mxu0 0.0
    %363 = vmatpush1.msra.mxu0 %v338
    %364 = vmatprep.subr.mxu0 0.0
    %365 = vmatpush1.msra.mxu0 %v339
    %366 = vmatprep.subr.mxu0 0.0
    %367 = vmatpush1.msra.mxu0 %v340
    %368 = vmatprep.subr.mxu0 0.0
    %369 = vmatpush1.msra.mxu0 %v341
    %370 = vmatprep.subr.mxu0 0.0
    %371 = vmatpush1.msra.mxu0 %v342
    %372 = vmatprep.subr.mxu0 0.0
    %373 = vmatpush1.msra.mxu0 %v343
    %374 = vmatprep.subr.mxu0 0.0
    %375 = vmatpush1.msra.mxu0 %v344
    %376 = vmatprep.subr.mxu0 0.0
    %377 = vmatpush1.msra.mxu0 %v345
    %378 = vmatprep.subr.mxu0 0.0
    %379 = vmatpush1.msra.mxu0 %v346
    %380 = vmatprep.subr.mxu0 0.0
    %381 = vmatpush1.msra.mxu0 %v347
    %382 = vmatprep.subr.mxu0 0.0
    %383 = vmatpush1.msra.mxu0 %v348
    %384 = vmatprep.subr.mxu0 0.0
    %385 = vmatpush1.msra.mxu0 %v349
    %386 = vmatprep.subr.mxu0 0.0
    %387 = vmatpush1.msra.mxu0 %v350
    %388 = vmatprep.subr.mxu0 0.0
    %389 = vmatpush1.msra.mxu0 %v351
    %390 = vmatprep.subr.mxu0 0.0
    %391 = vmatpush1.msra.mxu0 %v352
    %392 = vmatprep.subr.mxu0 0.0
    %393 = vmatpush1.msra.mxu0 0.0
    %394 = vmatprep.subr.mxu0 0.0
    %395 = vmatpush1.msra.mxu0 0.0
    %396 = vmatprep.subr.mxu0 0.0
    %397 = vmatpush1.msra.mxu0 0.0
    %398 = vmatprep.subr.mxu0 0.0
    %399 = vmatpush1.msra.mxu0 0.0
    %400 = vmatprep.subr.mxu0 0.0
    %401 = vmatpush1.msra.mxu0 0.0
    %402 = vmatprep.subr.mxu0 0.0
    %403 = vmatpush1.msra.mxu0 0.0
    %404 = vmatprep.subr.mxu0 0.0
    %405 = vmatpush1.msra.mxu0 0.0
    %406 = vmatprep.subr.mxu0 0.0
    %407 = vmatpush1.msra.mxu0 0.0
    %408 = vmatprep.subr.mxu0 0.0
    %409 = vmatpush1.msra.mxu0 0.0
    %410 = vmatprep.subr.mxu0 0.0
    %411 = vmatpush1.msra.mxu0 0.0
    %412 = vmatprep.subr.mxu0 0.0
    %413 = vmatpush1.msra.mxu0 0.0
    %414 = vmatprep.subr.mxu0 0.0
    %415 = vmatpush1.msra.mxu0 0.0
    %416 = vmatprep.subr.mxu0 0.0
    %417 = vmatpush1.msra.mxu0 0.0
    %418 = vmatprep.subr.mxu0 0.0
    %419 = vmatpush1.msra.mxu0 0.0
    %420 = vmatprep.subr.mxu0 0.0
    %421 = vmatpush1.msra.mxu0 0.0
    %422 = vmatprep.subr.mxu0 0.0
    %423 = vmatpush1.msra.mxu0 0.0
    %424 = vmatprep.mubr.f32.mxu0 0.0
    %425 = vmatmul.mubr.f32.gmra.mrb[0].mxu0 %v335
    %v426 = vpop.f32.mrb[0].mxu0
    %v427 = vadd.f32 %v358, %v426
    %v428 = vpop.f32.mrb[0].mxu0
    %429 = vdwg.mxu0
    %430 = vst [vmem:[#allocation10] sm:$0x3] %v427
    // Predicated region
    $region54: #{tpu_custom_call.1} parent=1 // pred_check
      _
    $region55: #{tpu_custom_call.1} parent=1 // pred_check_branch
      %432 = sbr.rel (0) target = $region57
    $region56: #{tpu_custom_call.1} parent=1 // pred_region
      %s434 = ssub.s32 32, 32
      %435 = vsyncadd [#allocation4], %s434
      %s437 = sshll.u32 [#allocation10], 4
      %s438 = int_to_ptr.vmem [resolvable:$true] %s437
      %440 = dma.vmem_to_hbm [thread:$0]  %s438, 32, %s9, [#allocation4]
    $region57: #{tpu_custom_call.1} parent=1 // pred_fallthru
      _
    // Predicated region
    $region58: #{tpu_custom_call.1} parent=1 // pred_check
      _
    $region59: #{tpu_custom_call.1} parent=1 // pred_check_branch
      %442 = sbr.rel (0) target = $region61
    $region60: #{tpu_custom_call.1} parent=1 // pred_region
      %s444 = ssub.s32 32, 32
      %445 = vsyncadd [#allocation12], %s444
      %s447 = sshll.u32 [#allocation11], 4
      %s448 = int_to_ptr.vmem [resolvable:$true] %s447
      %450 = dma.vmem_to_hbm [thread:$0]  %s448, 32, %s10, [#allocation12]
    $region61: #{tpu_custom_call.1} parent=1 // pred_fallthru
      _
    // Predicated region
    $region62: #{tpu_custom_call.1} parent=1 // pred_check
      _
    $region63: #{tpu_custom_call.1} parent=1 // pred_check_branch
      %452 = sbr.rel (0) target = $region65
    $region64: #{tpu_custom_call.1} parent=1 // pred_region
      %453 = dma.done [#allocation4], 32
    $region65: #{tpu_custom_call.1} parent=1 // pred_fallthru
      _
    // Predicated region
    $region66: #{tpu_custom_call.1} parent=1 // pred_check
      _
    $region67: #{tpu_custom_call.1} parent=1 // pred_check_branch
      %455 = sbr.rel (0) target = $region69
    $region68: #{tpu_custom_call.1} parent=1 // pred_region
      %456 = dma.done [#allocation12], 32
    $region69: #{tpu_custom_call.1} parent=1 // pred_fallthru
      _
    %457 = vsyncpa [#allocation3], 1
    %458 = vsyncpa [#allocation6], 1
    %459 = vsyncpa [#allocation9], 1
    %460 = vsyncpa [#allocation4], 1
    %461 = vsyncpa [#allocation12], 1

</llo_original>
